<compile_context>
chip_gen: v7x
topology: tpu7x:2x2x1
jax: 0.10.0
libtpu: 0.0.40
codegen_flags: <defaults>
</compile_context>

<pallas_src>
import functools

import jax
import jax.numpy as jnp
from jax import lax
from jax.experimental import pallas as pl
from jax.experimental.pallas import tpu as pltpu

LANE = 128
MAX_TILE_BYTES = 4 * 1024 * 1024   # per-input, per-pipeline-buffer block size
                                   # (2 inputs x 2 buffers x 4 MiB = 16 MiB VMEM)

_STREAM_DTYPES = (jnp.dtype(jnp.float32), jnp.dtype(jnp.bfloat16),
                  jnp.dtype(jnp.float16))


def _cdiv(a, b):
    return -(-a // b)


def _round_up(a, b):
    return _cdiv(a, b) * b


def _default_num_partitions():
    """2 on chips whose 'parallel' grid axis spans 2 TensorCores (v7x, v4/v5p
    megacore); 1 on single-TC inference chips (v5e/v6e) where that axis is
    just a serial outer loop."""
    try:
        kind = jax.devices()[0].device_kind.lower()
    except Exception:
        return 1
    if any(tag in kind for tag in ("v7", "7x", "v4", "v5p")):
        return 2
    return 1


def _stream_dtype(dt):
    dt = jnp.dtype(dt)
    return dt if dt in _STREAM_DTYPES else jnp.dtype(jnp.float32)


def _pow_weight(x, alpha):
    """x^alpha for x >= epsilon > 0, specialized on the static alpha."""
    if alpha == 0.0:
        return jnp.ones_like(x)
    if alpha == 0.25:
        return jnp.sqrt(jnp.sqrt(x))
    if alpha == 0.5:
        return jnp.sqrt(x)           # single EUP op instead of log+exp
    if alpha == 1.0:
        return x
    if alpha == 1.5:
        return x * jnp.sqrt(x)
    if alpha == 2.0:
        return x * x
    if alpha == 3.0:
        return x * x * x
    if alpha == -0.5:
        return lax.rsqrt(x)
    if alpha == -1.0:
        return 1.0 / x
    return jnp.exp(alpha * jnp.log(x))   # general path (x >= eps > 0)


def _loss_kernel(p_ref, t_ref, w_out, wse_out, *, alpha, epsilon, tile_m,
                 blocks_per_part, full_rows, lane_rem, needs_mask):
    i = pl.program_id(1)

    @pl.when(i == 0)
    def _():
        w_out[...] = jnp.zeros_like(w_out)
        wse_out[...] = jnp.zeros_like(wse_out)

    # In-kernel upcast: 16-bit inputs stream at native width from HBM.
    t = t_ref[...].astype(jnp.float32)
    p = p_ref[...].astype(jnp.float32)

    w = _pow_weight(jnp.abs(t) + epsilon, alpha)
    d = p - t
    wse = w * d * d

    if needs_mask:
        # Zero the contribution of (a) lane-pad zeros in the last real row,
        # (b) unspecified rows of a partially out-of-bounds last block and
        # (c) duplicated blocks coming from the clamped index_map.  Both w and
        # wse are masked so sum(w) stays exact.
        g = pl.program_id(0) * blocks_per_part + i
        row_ids = g * tile_m + lax.broadcasted_iota(jnp.int32, (tile_m, LANE), 0)
        if lane_rem:
            lane_ids = lax.broadcasted_iota(jnp.int32, (tile_m, LANE), 1)
            valid = (row_ids < full_rows) | ((row_ids == full_rows) &
                                             (lane_ids < lane_rem))
        else:
            valid = row_ids < full_rows
        w = jnp.where(valid, w, 0.0)
        wse = jnp.where(valid, wse, 0.0)

    # Fold the (tile_m, 128) tile into vreg-sized (8, 128) partial sums and
    # accumulate into the resident per-partition output block (pure VALU adds,
    # no XLU).
    w_out[...] += w.reshape(-1, 8, LANE).sum(axis=0)
    wse_out[...] += wse.reshape(-1, 8, LANE).sum(axis=0)


def magnitude_weighted_mse_loss(predictions, targets, alpha=0.5, epsilon=1.0,
                                num_partitions=None,
                                max_tile_bytes=MAX_TILE_BYTES):
    assert predictions.shape == targets.shape
    alpha = float(alpha)
    epsilon = float(epsilon)
    n = int(predictions.size)

    p_dtype = _stream_dtype(predictions.dtype)
    t_dtype = _stream_dtype(targets.dtype)
    max_item = max(p_dtype.itemsize, t_dtype.itemsize)
    # 16-bit inputs pack two rows per sublane -> block rows multiple of 16.
    sub = max(32 // p_dtype.itemsize, 32 // t_dtype.itemsize)

    if num_partitions is None:
        num_partitions = _default_num_partitions()
    p_req = max(1, int(num_partitions))

    rows = _cdiv(n, LANE)
    rows_aligned = _round_up(rows, sub)

    cap_rows = max(sub, (max_tile_bytes // (LANE * max_item)) // sub * sub)
    # Aim for >= 2 blocks per partition so block i+1's DMA overlaps block i's
    # compute; cap at ~4 MiB blocks to amortize the ~0.35 us per-step overhead.
    tile_cand = min(cap_rows, _round_up(_cdiv(rows_aligned, p_req * 2), sub))

    if tile_cand >= rows_aligned:
        tile_m, p_eff, total_blocks, bpp = rows_aligned, 1, 1, 1
    else:
        tile_m = tile_cand
        total_blocks = _cdiv(rows_aligned, tile_m)
        p_eff = min(p_req, total_blocks)
        bpp = _cdiv(total_blocks, p_eff)

    padded_elems = rows_aligned * LANE
    full_rows, lane_rem = divmod(n, LANE)
    needs_mask = (p_eff * bpp * tile_m * LANE) != n

    def to2d(x, dt):
        # Reshape of a contiguous array is free; the jnp.pad copy happens only
        # when n is not already a multiple of 128*sub (rare / tiny inputs).
        flat = x.reshape(-1).astype(dt)
        if padded_elems != n:
            flat = jnp.pad(flat, (0, padded_elems - n))
        return flat.reshape(rows_aligned, LANE)

    p2d = to2d(predictions, p_dtype)
    t2d = to2d(targets, t_dtype)

    kernel = functools.partial(
        _loss_kernel, alpha=alpha, epsilon=epsilon, tile_m=tile_m,
        blocks_per_part=bpp, full_rows=full_rows, lane_rem=lane_rem,
        needs_mask=needs_mask)

    # Clamp phantom trailing block indices into range; their contribution is
    # removed by the in-kernel mask.
    def in_map(c, i):
        return (jnp.minimum(c * bpp + i, total_blocks - 1), 0)

    in_spec = pl.BlockSpec((tile_m, LANE), in_map)
    out_spec = pl.BlockSpec((8, LANE), lambda c, i: (c, 0))

    w_parts, wse_parts = pl.pallas_call(
        kernel,
        out_shape=(
            jax.ShapeDtypeStruct((p_eff * 8, LANE), jnp.float32),
            jax.ShapeDtypeStruct((p_eff * 8, LANE), jnp.float32),
        ),
        grid_spec=pltpu.PrefetchScalarGridSpec(
            num_scalar_prefetch=0,
            grid=(p_eff, bpp),
            in_specs=[in_spec, in_spec],
            out_specs=[out_spec, out_spec],
        ),
        compiler_params=pltpu.CompilerParams(
            dimension_semantics=("parallel", "arbitrary"),
            vmem_limit_bytes=32 * 1024 * 1024),
    )(p2d, t2d)

    # loss = sum(w * (p - t)^2) / sum(w)  ==  mean((p - t)^2 * w / mean(w))
    return jnp.sum(wse_parts) / jnp.sum(w_parts)


def _reference_loss(predictions, targets, alpha=0.5, epsilon=1.0):
    p = predictions.astype(jnp.float32)
    t = targets.astype(jnp.float32)
    w = jnp.power(jnp.abs(t) + epsilon, alpha)
    w = w / jnp.mean(w)
    return jnp.mean((p - t) ** 2 * w)


if __name__ == "__main__":
    key = jax.random.PRNGKey(0)
    kp, kt = jax.random.split(key)

    # Case 1: NCHW fp32 input whose size divides evenly (no pad, no mask).
    x_shape = (2, 4, 16, 16)
    predictions = jax.random.normal(kp, x_shape, dtype=jnp.float32)
    targets = 3.0 * jax.random.normal(kt, x_shape, dtype=jnp.float32)

    loss = jax.block_until_ready(
        magnitude_weighted_mse_loss(predictions, targets, alpha=0.5, epsilon=1.0))
    ref = jax.block_until_ready(
        _reference_loss(predictions, targets, alpha=0.5, epsilon=1.0))
    assert jnp.allclose(loss, ref, rtol=1e-5, atol=1e-5), (loss, ref)

    # Case 2: ragged size + bf16 inputs (exercises native 16-bit streaming,
    # the in-kernel f32 upcast and the in-kernel tail mask).
    kp2, kt2 = jax.random.split(jax.random.PRNGKey(1))
    y_shape = (3, 5, 7)
    p2 = jax.random.normal(kp2, y_shape, dtype=jnp.bfloat16)
    t2 = (2.0 * jax.random.normal(kt2, y_shape)).astype(jnp.bfloat16)

    loss2 = jax.block_until_ready(
        magnitude_weighted_mse_loss(p2, t2, alpha=0.5, epsilon=1.0))
    ref2 = jax.block_until_ready(_reference_loss(p2, t2, alpha=0.5, epsilon=1.0))
    assert jnp.allclose(loss2, ref2, rtol=1e-4, atol=1e-5), (loss2, ref2)

    print("KERNEL_OK")
</pallas_src>

<mosaic_0001>
module attributes {stable_mosaic.version = 11 : i64} {
  func.func @_loss_kernel(%arg0: i32, %arg1: i32, %arg2: memref<8x128xf32, #tpu.memory_space<vmem>>, %arg3: memref<8x128xf32, #tpu.memory_space<vmem>>, %arg4: memref<8x128xf32, #tpu.memory_space<vmem>>, %arg5: memref<8x128xf32, #tpu.memory_space<vmem>>) attributes {dimension_semantics = [#tpu.dimension_semantics<parallel>, #tpu.dimension_semantics<arbitrary>], iteration_bounds = array<i64: 1, 2>, scalar_prefetch = 0 : i64, scratch_operands = 0 : i64, tpu.core_type = #tpu.core_type<tc>, window_params = [{transform_indices = @transform_0, window_bounds = array<i64: 8, 128>}, {transform_indices = @transform_1, window_bounds = array<i64: 8, 128>}, {transform_indices = @transform_2, window_bounds = array<i64: 8, 128>}, {transform_indices = @transform_3, window_bounds = array<i64: 8, 128>}]} {
    %c0_i32 = arith.constant 0 : i32
    %0 = arith.cmpi eq, %arg1, %c0_i32 : i32
    %1 = arith.extui %0 : i1 to i32
    %c0_i32_0 = arith.constant 0 : i32
    %2 = arith.cmpi ne, %1, %c0_i32_0 : i32
    scf.if %2 {
      %cst_14 = arith.constant 0.000000e+00 : f32
      %22 = vector.broadcast %cst_14 : f32 to vector<8x128xf32>
      %c0_15 = arith.constant 0 : index
      %c0_16 = arith.constant 0 : index
      %23 = vector.load %arg4[%c0_15, %c0_16] : memref<8x128xf32, #tpu.memory_space<vmem>>, vector<8x128xf32>
      tpu.vector_store %arg4[%c0_15, %c0_16], %22 {strides = array<i32>} : memref<8x128xf32, #tpu.memory_space<vmem>>, vector<8x128xf32>,
      %cst_17 = arith.constant 0.000000e+00 : f32
      %24 = vector.broadcast %cst_17 : f32 to vector<8x128xf32>
      %c0_18 = arith.constant 0 : index
      %c0_19 = arith.constant 0 : index
      %25 = vector.load %arg5[%c0_18, %c0_19] : memref<8x128xf32, #tpu.memory_space<vmem>>, vector<8x128xf32>
      tpu.vector_store %arg5[%c0_18, %c0_19], %24 {strides = array<i32>} : memref<8x128xf32, #tpu.memory_space<vmem>>, vector<8x128xf32>,
    } else {
    }
    %c0 = arith.constant 0 : index
    %c0_1 = arith.constant 0 : index
    %3 = vector.load %arg3[%c0, %c0_1] : memref<8x128xf32, #tpu.memory_space<vmem>>, vector<8x128xf32>
    %c0_2 = arith.constant 0 : index
    %c0_3 = arith.constant 0 : index
    %4 = vector.load %arg2[%c0_2, %c0_3] : memref<8x128xf32, #tpu.memory_space<vmem>>, vector<8x128xf32>
    %5 = math.absf %3 : vector<8x128xf32>
    %cst = arith.constant 1.000000e+00 : f32
    %6 = vector.broadcast %cst : f32 to vector<8x128xf32>
    %7 = arith.addf %5, %6 : vector<8x128xf32>
    %8 = math.sqrt %7 : vector<8x128xf32>
    %9 = arith.subf %4, %3 : vector<8x128xf32>
    %10 = arith.mulf %8, %9 : vector<8x128xf32>
    %11 = arith.mulf %10, %9 : vector<8x128xf32>
    %c0_4 = arith.constant 0 : index
    %c0_5 = arith.constant 0 : index
    %12 = vector.load %arg4[%c0_4, %c0_5] : memref<8x128xf32, #tpu.memory_space<vmem>>, vector<8x128xf32>
    %13 = vector.shape_cast %8 : vector<8x128xf32> to vector<1x8x128xf32>
    %cst_6 = arith.constant dense<0.000000e+00> : vector<8x128xf32>
    %14 = vector.multi_reduction <add>, %13, %cst_6 [0] : vector<1x8x128xf32> to vector<8x128xf32>
    %15 = arith.addf %12, %14 : vector<8x128xf32>
    %c0_7 = arith.constant 0 : index
    %c0_8 = arith.constant 0 : index
    %16 = vector.load %arg4[%c0_7, %c0_8] : memref<8x128xf32, #tpu.memory_space<vmem>>, vector<8x128xf32>
    tpu.vector_store %arg4[%c0_7, %c0_8], %15 {strides = array<i32>} : memref<8x128xf32, #tpu.memory_space<vmem>>, vector<8x128xf32>,
    %c0_9 = arith.constant 0 : index
    %c0_10 = arith.constant 0 : index
    %17 = vector.load %arg5[%c0_9, %c0_10] : memref<8x128xf32, #tpu.memory_space<vmem>>, vector<8x128xf32>
    %18 = vector.shape_cast %11 : vector<8x128xf32> to vector<1x8x128xf32>
    %cst_11 = arith.constant dense<0.000000e+00> : vector<8x128xf32>
    %19 = vector.multi_reduction <add>, %18, %cst_11 [0] : vector<1x8x128xf32> to vector<8x128xf32>
    %20 = arith.addf %17, %19 : vector<8x128xf32>
    %c0_12 = arith.constant 0 : index
    %c0_13 = arith.constant 0 : index
    %21 = vector.load %arg5[%c0_12, %c0_13] : memref<8x128xf32, #tpu.memory_space<vmem>>, vector<8x128xf32>
    tpu.vector_store %arg5[%c0_12, %c0_13], %20 {strides = array<i32>} : memref<8x128xf32, #tpu.memory_space<vmem>>, vector<8x128xf32>,
    return
  }
  func.func @transform_0(%arg0: i32, %arg1: i32) -> (i32, i32) {
    %c2_i32 = arith.constant 2 : i32
    %0 = arith.muli %arg0, %c2_i32 : i32
    %1 = arith.addi %0, %arg1 : i32
    %c1_i32 = arith.constant 1 : i32
    %2 = arith.minsi %1, %c1_i32 : i32
    %c0_i32 = arith.constant 0 : i32
    %c0_i32_0 = arith.constant 0 : i32
    return %2, %c0_i32 : i32, i32
  }
  func.func @transform_1(%arg0: i32, %arg1: i32) -> (i32, i32) {
    %c2_i32 = arith.constant 2 : i32
    %0 = arith.muli %arg0, %c2_i32 : i32
    %1 = arith.addi %0, %arg1 : i32
    %c1_i32 = arith.constant 1 : i32
    %2 = arith.minsi %1, %c1_i32 : i32
    %c0_i32 = arith.constant 0 : i32
    %c0_i32_0 = arith.constant 0 : i32
    return %2, %c0_i32 : i32, i32
  }
  func.func @transform_2(%arg0: i32, %arg1: i32) -> (i32, i32) {
    %c0_i32 = arith.constant 0 : i32
    %c0_i32_0 = arith.constant 0 : i32
    return %arg0, %c0_i32 : i32, i32
  }
  func.func @transform_3(%arg0: i32, %arg1: i32) -> (i32, i32) {
    %c0_i32 = arith.constant 0 : i32
    %c0_i32_0 = arith.constant 0 : i32
    return %arg0, %c0_i32 : i32, i32
  }
}

</mosaic_0001>

<llo_original>
// kernel: tpu_custom_call.1
$region0: #{tpu_custom_call.1}
  #allocation0 [shape = 'u32[]', space=smem, size = 0x4, offset = 0x4, fixed_abs, tag = 'smem constant byte address 0x4 - core index']
  #allocation1 [shape = 'u32[144,128]{1,0:T(1,128)}', space=vmem, size = 0x12000, scoped, tag = 'internal scratch']
  %s0 = inlined_call_operand.hbm [shape: f32[16,128], index: 0, kind: input, shape index: {}]
  %s1 = inlined_call_operand.hbm [shape: f32[16,128], index: 1, kind: input, shape index: {}]
  %s2 = inlined_call_operand.hbm [shape: f32[8,128], index: 2, kind: output, shape index: {0}]
  %s3 = inlined_call_operand.hbm [shape: f32[8,128], index: 3, kind: output, shape index: {1}]
  %4 = xla_tuple %s2, %s3
  %s5 = sld [smem:[#allocation0]]
  $region61: #{tpu_custom_call.1} parent=0
    _
  %s7 = ssub.s32 1, %s5
  %s8 = scalar_select 0, %s7, %s5
  $region1: #{tpu_custom_call.1} parent=0
    #allocation2 [shape = 'u8[8192]{0}', space=vmem, size = 0x2000, scoped, tag = 'input window, operand 0']
    #allocation3 [shape = 's32[2]{0}', space=sflag, size = 0x8, scoped, tag = 'scoped memory for tpu_custom_call.1']
    #allocation4 [shape = 's32[2]{0}', space=sflag, size = 0x8, scoped, tag = 'scoped memory for tpu_custom_call.1']
    #allocation5 [shape = 'u8[8192]{0}', space=vmem, size = 0x2000, scoped, tag = 'input window, operand 1']
    #allocation6 [shape = 's32[2]{0}', space=sflag, size = 0x8, scoped, tag = 'scoped memory for tpu_custom_call.1']
    #allocation7 [shape = 'u8[4096]{0}', space=vmem, size = 0x1000, scoped, tag = 'output window, operand 0, single buffered']
    #allocation8 [shape = 'u8[4096]{0}', space=vmem, size = 0x1000, scoped, tag = 'output window, operand 1, single buffered']
    #allocation9 [shape = 's32[1]{0}', space=sflag, size = 0x4, scoped, tag = 'scoped memory for tpu_custom_call.1']
    %9 = vsyncpa [#allocation3], 0
    %s10 = scalar_lea.sflag [#allocation3], 1
    %11 = vsyncpa %s10, 0
    %12 = vsyncpa [#allocation6], 0
    %s13 = scalar_lea.sflag [#allocation6], 1
    %14 = vsyncpa %s13, 0
    %15 = vsyncpa [#allocation4], 0
    %16 = vsyncpa [#allocation9], 0
    loop: start=0, step=1, limit=4
    $region2: #{tpu_custom_call.1} parent=1 // loop_pre_header
      _
    $region3: #{tpu_custom_call.1} parent=1 // loop_header
      %s18 = sphi 0, %s22
      %p19 = scmp.ge.s32.totalorder %s18, 4
      %s25 = sphi 0, %s37
      %s26 = sphi 0, %s33
      %s27 = sphi 0, %s25
      %s28 = sphi 0, %s26
      %s29 = sphi 0, %s27
      %s30 = sphi 0, %s28
      %s48 = sphi 0, %s50
      %s51 = sphi 0, %s48
      %s52 = sphi 0, %s51
      %s68 = sphi 0, %s52
      %s82 = sphi 0, %s84
      %s85 = sphi 0, %s82
      %s86 = sphi 0, %s85
      %s102 = sphi 0, %s86
      %s108 = sphi 0, %s110
      %s111 = sphi 0, %s108
      %s112 = sphi 0, %s111
      %s128 = sphi 0, %s112
      %s134 = sphi 0, %s136
      %s137 = sphi 0, %s134
      %s138 = sphi 0, %s137
      %s154 = sphi 0, %s138
    $region4: #{tpu_custom_call.1} parent=1 // loop_header_branch
      %21 = sbr.rel (%p19) target = $region8
    $region5: #{tpu_custom_call.1} parent=1 // loop_body
      %s23 = ssub.s32 %s18, 1
      %s24 = ssub.s32 %s18, 2
      %s31 = sadd.s32 1, %s26
      %p32 = scmp.ge.s32.totalorder %s31, 2
      %s33 = scalar_select %p32, 0, %s31
      %s34 = sadd.s32 1, %s25
      %s35 = scalar_select %p32, %s34, %s25
      %p36 = scmp.ge.s32.totalorder %s35, 1
      %s37 = scalar_select %p36, 0, %s35
      %s38 = smul.u32 %s25, 2
      %s39 = sadd.s32 %s38, %s26
      %p40 = scmp.lt.s32.totalorder %s39, 1
      %s41 = scalar_select %p40, %s39, 1
      %s42 = smul.u32 %s37, 2
      %s43 = sadd.s32 %s42, %s33
      %p44 = scmp.lt.s32.totalorder %s43, 1
      %s45 = scalar_select %p44, %s43, 1
      %s46 = ssub.s32 %s41, %s45
      %p47 = scmp.eq.s32.totalorder %s46, 0
      %s49 = sadd.s32 %s48, 1
      %s50 = scalar_select %p47, %s48, %s49
      %p53 = pneg %p47
      %p54 = scmp.eq.s32.totalorder %s18, 1
      %p55 = por %p53, %p54
      %p56 = scmp.ne.s32.totalorder %s48, %s51
      %p57 = scmp.eq.s32.totalorder %s18, 0
      %p58 = por %p56, %p57
      %p59 = scmp.ne.s32.totalorder %s48, %s51
      %p60 = scmp.eq.s32.totalorder %s23, 1
      %p61 = por %p59, %p60
      %p62 = scmp.ne.s32.totalorder %s51, %s52
      %p63 = scmp.eq.s32.totalorder %s23, 0
      %p64 = por %p62, %p63
      %p65 = scmp.ne.s32.totalorder %s51, %s52
      %p66 = scmp.eq.s32.totalorder %s24, 1
      %p67 = por %p65, %p66
      %p69 = scmp.ne.s32.totalorder %s52, %s68
      %p70 = scmp.eq.s32.totalorder %s24, 0
      %p71 = por %p69, %p70
      %s72 = smul.u32 %s25, 2
      %s73 = sadd.s32 %s72, %s26
      %p74 = scmp.lt.s32.totalorder %s73, 1
      %s75 = scalar_select %p74, %s73, 1
      %s76 = smul.u32 %s37, 2
      %s77 = sadd.s32 %s76, %s33
      %p78 = scmp.lt.s32.totalorder %s77, 1
      %s79 = scalar_select %p78, %s77, 1
      %s80 = ssub.s32 %s75, %s79
      %p81 = scmp.eq.s32.totalorder %s80, 0
      %s83 = sadd.s32 %s82, 1
      %s84 = scalar_select %p81, %s82, %s83
      %p87 = pneg %p81
      %p88 = scmp.eq.s32.totalorder %s18, 1
      %p89 = por %p87, %p88
      %p90 = scmp.ne.s32.totalorder %s82, %s85
      %p91 = scmp.eq.s32.totalorder %s18, 0
      %p92 = por %p90, %p91
      %p93 = scmp.ne.s32.totalorder %s82, %s85
      %p94 = scmp.eq.s32.totalorder %s23, 1
      %p95 = por %p93, %p94
      %p96 = scmp.ne.s32.totalorder %s85, %s86
      %p97 = scmp.eq.s32.totalorder %s23, 0
      %p98 = por %p96, %p97
      %p99 = scmp.ne.s32.totalorder %s85, %s86
      %p100 = scmp.eq.s32.totalorder %s24, 1
      %p101 = por %p99, %p100
      %p103 = scmp.ne.s32.totalorder %s86, %s102
      %p104 = scmp.eq.s32.totalorder %s24, 0
      %p105 = por %p103, %p104
      %s106 = ssub.s32 %s25, %s37
      %p107 = scmp.eq.s32.totalorder %s106, 0
      %s109 = sadd.s32 %s108, 1
      %s110 = scalar_select %p107, %s108, %s109
      %p113 = pneg %p107
      %p114 = scmp.eq.s32.totalorder %s18, 1
      %p115 = por %p113, %p114
      %p116 = scmp.ne.s32.totalorder %s108, %s111
      %p117 = scmp.eq.s32.totalorder %s18, 0
      %p118 = por %p116, %p117
      %p119 = scmp.ne.s32.totalorder %s108, %s111
      %p120 = scmp.eq.s32.totalorder %s23, 1
      %p121 = por %p119, %p120
      %p122 = scmp.ne.s32.totalorder %s111, %s112
      %p123 = scmp.eq.s32.totalorder %s23, 0
      %p124 = por %p122, %p123
      %p125 = scmp.ne.s32.totalorder %s111, %s112
      %p126 = scmp.eq.s32.totalorder %s24, 1
      %p127 = por %p125, %p126
      %p129 = scmp.ne.s32.totalorder %s112, %s128
      %p130 = scmp.eq.s32.totalorder %s24, 0
      %p131 = por %p129, %p130
      %s132 = ssub.s32 %s25, %s37
      %p133 = scmp.eq.s32.totalorder %s132, 0
      %s135 = sadd.s32 %s134, 1
      %s136 = scalar_select %p133, %s134, %s135
      %p139 = pneg %p133
      %p140 = scmp.eq.s32.totalorder %s18, 1
      %p141 = por %p139, %p140
      %p142 = scmp.ne.s32.totalorder %s134, %s137
      %p143 = scmp.eq.s32.totalorder %s18, 0
      %p144 = por %p142, %p143
      %p145 = scmp.ne.s32.totalorder %s134, %s137
      %p146 = scmp.eq.s32.totalorder %s23, 1
      %p147 = por %p145, %p146
      %p148 = scmp.ne.s32.totalorder %s137, %s138
      %p149 = scmp.eq.s32.totalorder %s23, 0
      %p150 = por %p148, %p149
      %p151 = scmp.ne.s32.totalorder %s137, %s138
      %p152 = scmp.eq.s32.totalorder %s24, 1
      %p153 = por %p151, %p152
      %p155 = scmp.ne.s32.totalorder %s138, %s154
      %p156 = scmp.eq.s32.totalorder %s24, 0
      %p157 = por %p155, %p156
      %p158 = scmp.le.s32.totalorder 1, %s18
      %p159 = scmp.lt.s32.totalorder %s18, 3
      %p160 = pnand %p158, %p159
      %p161 = pneg %p160
      // Predicated region
      $region9: #{tpu_custom_call.1} parent=5 // pred_check
        _
      $region10: #{tpu_custom_call.1} parent=5 // pred_check_branch
        %163 = sbr.rel (%p160) target = $region12
      $region11: #{tpu_custom_call.1} parent=5 // pred_region
        %s164 = ssub.s32 %s18, 1
      $region12: #{tpu_custom_call.1} parent=5 // pred_fallthru
        _
      %p165 = scmp.lt.s32.totalorder %s18, 2
      // Predicated region
      $region13: #{tpu_custom_call.1} parent=5 // pred_check
        %p166 = pneg %p165
      $region14: #{tpu_custom_call.1} parent=5 // pred_check_branch
        %168 = sbr.rel (%p166) target = $region16
      $region15: #{tpu_custom_call.1} parent=5 // pred_region
        // Predicated region
        $region17: #{tpu_custom_call.1} parent=15 // pred_check
          %p169 = pneg %p58
        $region18: #{tpu_custom_call.1} parent=15 // pred_check_branch
          %171 = sbr.rel (%p169) target = $region20
        $region19: #{tpu_custom_call.1} parent=15 // pred_region
          %s172 = sand.u32 %s48, 1
          %s173 = scalar_lea.sflag [#allocation3], %s172
          %s174 = sand.u32 %s48, 1
          %s175 = smul.addr %s174, 8
          %s176 = scalar_lea.vmem [#allocation2], %s175
          %s177 = smul.u32 %s25, 2
          %s178 = sadd.s32 %s177, %s26
          %p179 = scmp.lt.s32.totalorder %s178, 1
          %s180 = scalar_select %p179, %s178, 1
          %s182 = ssub.s32 128, 128
          %183 = vsyncadd %s173, %s182
          %s184 = smul.addr %s180, 128
          %s185 = scalar_lea.hbm %s0, %s184
          %s187 = sshll.u32 %s176, 4
          %s188 = int_to_ptr.vmem [resolvable:$true] %s187
          %190 = dma.hbm_to_vmem [thread:$0]  %s185, 128, %s188, %s173
        $region20: #{tpu_custom_call.1} parent=15 // pred_fallthru
          _
        // Predicated region
        $region21: #{tpu_custom_call.1} parent=15 // pred_check
          %p191 = pneg %p92
        $region22: #{tpu_custom_call.1} parent=15 // pred_check_branch
          %193 = sbr.rel (%p191) target = $region24
        $region23: #{tpu_custom_call.1} parent=15 // pred_region
          %s194 = sand.u32 %s82, 1
          %s195 = scalar_lea.sflag [#allocation6], %s194
          %s196 = sand.u32 %s82, 1
          %s197 = smul.addr %s196, 8
          %s198 = scalar_lea.vmem [#allocation5], %s197
          %s199 = smul.u32 %s25, 2
          %s200 = sadd.s32 %s199, %s26
          %p201 = scmp.lt.s32.totalorder %s200, 1
          %s202 = scalar_select %p201, %s200, 1
          %s204 = ssub.s32 128, 128
          %205 = vsyncadd %s195, %s204
          %s206 = smul.addr %s202, 128
          %s207 = scalar_lea.hbm %s1, %s206
          %s209 = sshll.u32 %s198, 4
          %s210 = int_to_ptr.vmem [resolvable:$true] %s209
          %212 = dma.hbm_to_vmem [thread:$0]  %s207, 128, %s210, %s195
        $region24: #{tpu_custom_call.1} parent=15 // pred_fallthru
          _
      $region16: #{tpu_custom_call.1} parent=5 // pred_fallthru
        _
      %p213 = scmp.le.s32.totalorder 1, %s18
      %p214 = scmp.lt.s32.totalorder %s18, 3
      %p215 = pnand %p213, %p214
      %p216 = pneg %p215
      // Predicated region
      $region25: #{tpu_custom_call.1} parent=5 // pred_check
        _
      $region26: #{tpu_custom_call.1} parent=5 // pred_check_branch
        %218 = sbr.rel (%p215) target = $region28
      $region27: #{tpu_custom_call.1} parent=5 // pred_region
        %s219 = ssub.s32 %s18, 1
        %s220 = sand.u32 %s51, 1
        %s221 = scalar_lea.sflag [#allocation3], %s220
        %s222 = sand.u32 %s51, 1
        %s223 = smul.addr %s222, 8
        %s224 = scalar_lea.vmem [#allocation2], %s223
        // Predicated region
        $region29: #{tpu_custom_call.1} parent=27 // pred_check
          %p225 = pneg %p64
        $region30: #{tpu_custom_call.1} parent=27 // pred_check_branch
          %227 = sbr.rel (%p225) target = $region32
        $region31: #{tpu_custom_call.1} parent=27 // pred_region
          %228 = dma.done %s221, 128
        $region32: #{tpu_custom_call.1} parent=27 // pred_fallthru
          _
        %s229 = sand.u32 %s85, 1
        %s230 = scalar_lea.sflag [#allocation6], %s229
        %s231 = sand.u32 %s85, 1
        %s232 = smul.addr %s231, 8
        %s233 = scalar_lea.vmem [#allocation5], %s232
        // Predicated region
        $region33: #{tpu_custom_call.1} parent=27 // pred_check
          %p234 = pneg %p98
        $region34: #{tpu_custom_call.1} parent=27 // pred_check_branch
          %236 = sbr.rel (%p234) target = $region36
        $region35: #{tpu_custom_call.1} parent=27 // pred_region
          %237 = dma.done %s230, 128
        $region36: #{tpu_custom_call.1} parent=27 // pred_fallthru
          _
        %s238 = sand.u32 %s51, 1
        %s239 = scalar_lea.sflag [#allocation3], %s238
        %s240 = sand.u32 %s51, 1
        %s241 = smul.addr %s240, 8
        %s242 = scalar_lea.vmem [#allocation2], %s241
        %p243 = pneg %p64
        %p244 = pneg %p61
        %s245 = sand.u32 %s85, 1
        %s246 = scalar_lea.sflag [#allocation6], %s245
        %s247 = sand.u32 %s85, 1
        %s248 = smul.addr %s247, 8
        %s249 = scalar_lea.vmem [#allocation5], %s248
        %p250 = pneg %p98
        %p251 = pneg %p95
        %p252 = pneg %p124
        %p253 = pneg %p121
        %p254 = pneg %p150
        %p255 = pneg %p147
        %s256 = smul.u32 %s27, 2
        %s257 = sadd.s32 %s256, %s28
        %p258 = scmp.lt.s32.totalorder %s257, 1
        %s259 = scalar_select %p258, %s257, 1
        %s260 = smul.u32 %s27, 2
        %s261 = sadd.s32 %s260, %s28
        %p262 = scmp.lt.s32.totalorder %s261, 1
        %s263 = scalar_select %p262, %s261, 1
        %p264 = scmp.eq.s32.totalorder %s28, 0
        // Predicated region
        $region37: #{tpu_custom_call.1} parent=27 // pred_check
          %p265 = pneg %p264
        $region38: #{tpu_custom_call.1} parent=27 // pred_check_branch
          %267 = sbr.rel (%p265) target = $region40
        $region39: #{tpu_custom_call.1} parent=27 // pred_region
          %268 = vst [vmem:[#allocation7] sm:$0xff] 0.0
          %269 = vst [vmem:[#allocation8] sm:$0xff] 0.0
        $region40: #{tpu_custom_call.1} parent=27 // pred_fallthru
          _
        %v270 = vld [vmem:[%s233] sm:$0xff]
        %v271 = vld [vmem:[%s224] sm:$0xff]
        %v272 = vand.u32 2147483647, %v270
        %v273 = vadd.f32 %v272, 1.0
        %v274 = vrsqrt.pop %v273
        %v275 = vmul.f32 %v273, %v274
        %vm276 = vcmp.eq.f32.partialorder %v273, inf
        %v277 = vsel %vm276, %v273, %v275
        %vm278 = vcmp.eq.f32.partialorder %v273, 0.0
        %v279 = vand.u32 %v273, 2147483648
        %v280 = vsel %vm278, %v279, %v277
        %v281 = vsub.f32 %v271, %v270
        %v282 = vmul.f32 %v280, %v281
        %v283 = vmul.f32 %v282, %v281
        %v284 = vld [vmem:[#allocation7] sm:$0xff]
        %v285 = vadd.f32 %v280, 0.0
        %v286 = vadd.f32 %v284, %v285
        %287 = vst [vmem:[#allocation7] sm:$0xff] %v286
        %v288 = vld [vmem:[#allocation8] sm:$0xff]
        %v289 = vadd.f32 %v283, 0.0
        %v290 = vadd.f32 %v288, %v289
        %291 = vst [vmem:[#allocation8] sm:$0xff] %v290
        // Predicated region
        $region41: #{tpu_custom_call.1} parent=27 // pred_check
          %p292 = pneg %p121
        $region42: #{tpu_custom_call.1} parent=27 // pred_check_branch
          %294 = sbr.rel (%p292) target = $region44
        $region43: #{tpu_custom_call.1} parent=27 // pred_region
          %s296 = ssub.s32 128, 128
          %297 = vsyncadd [#allocation4], %s296
          %s298 = smul.addr %s27, 128
          %s299 = scalar_lea.hbm %s2, %s298
          %s301 = sshll.u32 [#allocation7], 4
          %s302 = int_to_ptr.vmem [resolvable:$true] %s301
          %304 = dma.vmem_to_hbm [thread:$0]  %s302, 128, %s299, [#allocation4]
        $region44: #{tpu_custom_call.1} parent=27 // pred_fallthru
          _
        // Predicated region
        $region45: #{tpu_custom_call.1} parent=27 // pred_check
          %p305 = pneg %p147
        $region46: #{tpu_custom_call.1} parent=27 // pred_check_branch
          %307 = sbr.rel (%p305) target = $region48
        $region47: #{tpu_custom_call.1} parent=27 // pred_region
          %s309 = ssub.s32 128, 128
          %310 = vsyncadd [#allocation9], %s309
          %s311 = smul.addr %s27, 128
          %s312 = scalar_lea.hbm %s3, %s311
          %s314 = sshll.u32 [#allocation8], 4
          %s315 = int_to_ptr.vmem [resolvable:$true] %s314
          %317 = dma.vmem_to_hbm [thread:$0]  %s315, 128, %s312, [#allocation9]
        $region48: #{tpu_custom_call.1} parent=27 // pred_fallthru
          _
        // Predicated region
        $region49: #{tpu_custom_call.1} parent=27 // pred_check
          %p318 = pneg %p121
        $region50: #{tpu_custom_call.1} parent=27 // pred_check_branch
          %320 = sbr.rel (%p318) target = $region52
        $region51: #{tpu_custom_call.1} parent=27 // pred_region
          %321 = dma.done [#allocation4], 128
        $region52: #{tpu_custom_call.1} parent=27 // pred_fallthru
          _
        // Predicated region
        $region53: #{tpu_custom_call.1} parent=27 // pred_check
          %p322 = pneg %p147
        $region54: #{tpu_custom_call.1} parent=27 // pred_check_branch
          %324 = sbr.rel (%p322) target = $region56
        $region55: #{tpu_custom_call.1} parent=27 // pred_region
          %325 = dma.done [#allocation9], 128
        $region56: #{tpu_custom_call.1} parent=27 // pred_fallthru
          _
      $region28: #{tpu_custom_call.1} parent=5 // pred_fallthru
        _
      %p326 = scmp.le.s32.totalorder 2, %s18
      // Predicated region
      $region57: #{tpu_custom_call.1} parent=5 // pred_check
        %p327 = pneg %p326
      $region58: #{tpu_custom_call.1} parent=5 // pred_check_branch
        %329 = sbr.rel (%p327) target = $region60
      $region59: #{tpu_custom_call.1} parent=5 // pred_region
        %s330 = ssub.s32 %s18, 2
      $region60: #{tpu_custom_call.1} parent=5 // pred_fallthru
        _
    $region6: #{tpu_custom_call.1} parent=1 // loop_footer
      %s22 = sadd.s32 1, %s18
    $region7: #{tpu_custom_call.1} parent=1 // loop_footer_branch
      %17 = sbr.rel target = $region3
    $region8: #{tpu_custom_call.1} parent=1 // loop_exit
      _
    %331 = vsyncpa [#allocation3], 1
    %s332 = scalar_lea.sflag [#allocation3], 1
    %333 = vsyncpa %s332, 1
    %334 = vsyncpa [#allocation6], 1
    %s335 = scalar_lea.sflag [#allocation6], 1
    %336 = vsyncpa %s335, 1
    %337 = vsyncpa [#allocation4], 1
    %s338 = scalar_lea.sflag [#allocation4], 1
    %339 = vsyncpa %s338, 1
    %340 = vsyncpa [#allocation9], 1

</llo_original>
